<compile_context>
chip_gen: v5e
topology: v5e:2x2
jax: 0.10.0
libtpu: 0.0.40
codegen_flags: <defaults>
</compile_context>

<pallas_src>
import numpy as np
import jax
import jax.numpy as jnp
from jax.experimental import pallas as pl
from jax.experimental.pallas import tpu as pltpu


def _round_up(x: int, m: int) -> int:
    return ((x + m - 1) // m) * m


def _sublane_align(dtype) -> int:
    # (8, 128) f32 tiles; packed dtypes tile (16,128) / (32,128).
    return max(8, 32 // jnp.dtype(dtype).itemsize)


def _time_encoder_kernel(t_ref, w_ref, o_ref):
    # t_ref: (TM, 1)  timestamps column for this row tile
    # w_ref: (1, D)   frequency weights (broadcast over rows)
    # o_ref: (TM, D)  cos(t * w)           -- module bias is zero
    o_ref[...] = jnp.cos(t_ref[...] * w_ref[...]).astype(o_ref.dtype)


def _time_encoder_bias_kernel(t_ref, w_ref, b_ref, o_ref):
    # General path for a trained (non-zero) bias.
    o_ref[...] = jnp.cos(t_ref[...] * w_ref[...] + b_ref[...]).astype(o_ref.dtype)


# VMEM budget for the double-buffered tiles; safe under the smallest default
# scoped-VMEM limit (v5e: 16 MiB), leaves headroom on v7x (32 MiB scoped).
_VMEM_BUDGET_BYTES = 12 * 1024 * 1024
_DEFAULT_ROW_TILE = 4096          # rows; x D=128 f32 => 2 MiB per output buffer
_SMALL_OUTPUT_BYTES = 1 << 20     # below this, skip pallas_call entirely


def time_encoder(timestamps, weight, bias=None, *, row_tile=_DEFAULT_ROW_TILE,
                 out_dtype=jnp.float32, xla_small_bytes=_SMALL_OUTPUT_BYTES):
    """TimeEncoder forward.

    timestamps: (B, L) float; weight: (time_dim,); bias: (time_dim,) or None
    (None == the module's zero-initialized bias, enables the faster kernel).
    Returns (B, L, time_dim) in `out_dtype` (use jnp.bfloat16 to halve HBM
    writeback when downstream accepts it).
    """
    B, L = timestamps.shape
    D = int(weight.shape[0])
    M = B * L
    out_bytes = jnp.dtype(out_dtype).itemsize

    w_f32 = weight.astype(jnp.float32)

    # --- small-input fast path: launch/per-step overhead dominates tiny inputs.
    if M * D * out_bytes < xla_small_bytes:
        arg = timestamps.astype(jnp.float32)[..., None] * w_f32[None, None, :]
        if bias is not None:
            arg = arg + bias.astype(jnp.float32)[None, None, :]
        return jnp.cos(arg).astype(out_dtype)

    sub = _sublane_align(out_dtype)

    # --- VMEM accounting (double-buffered): output tile + lane-padded
    # (row_tile, 1) f32 timestamp tile (128 lanes * 4 B = 512 B/row).
    per_row_bytes = 2 * (D * out_bytes + 128 * 4)
    max_tile = max(sub, (_VMEM_BUDGET_BYTES // per_row_bytes) // sub * sub)
    row_tile = max(sub, min(int(row_tile), max_tile))
    row_tile = _round_up(row_tile, sub)
    # Keep >= 2 grid steps when there is enough work so the "parallel" axis
    # can shard blocks across v7x's 2 TensorCores.
    if M >= 2 * sub:
        row_tile = min(row_tile, _round_up(pl.cdiv(M, 2), sub))

    grid = (pl.cdiv(M, row_tile),)   # ragged final block allowed; no padding

    t2d = timestamps.reshape(M, 1).astype(jnp.float32)
    w2d = w_f32.reshape(1, D)

    t_spec = pl.BlockSpec((row_tile, 1), lambda i: (i, 0))
    w_spec = pl.BlockSpec((1, D), lambda i: (0, 0))
    out_spec = pl.BlockSpec((row_tile, D), lambda i: (i, 0))

    # Tiny (1, D) params pad to (8, ceil(D/128)*128) f32, double-buffered.
    param_tile_bytes = 2 * 8 * _round_up(D, 128) * 4
    footprint = per_row_bytes * row_tile + 2 * param_tile_bytes
    vmem_limit = min(footprint + (4 << 20), 64 << 20)

    cost = pl.CostEstimate(
        flops=2 * M * D,
        transcendentals=M * D,
        bytes_accessed=M * D * out_bytes + 4 * M + 4 * D,
    )
    cparams = pltpu.CompilerParams(
        dimension_semantics=("parallel",),
        vmem_limit_bytes=int(vmem_limit),
    )

    if bias is None:
        out2d = pl.pallas_call(
            _time_encoder_kernel,
            out_shape=jax.ShapeDtypeStruct((M, D), out_dtype),
            grid_spec=pl.GridSpec(
                grid=grid,
                in_specs=[t_spec, w_spec],
                out_specs=out_spec,
            ),
            compiler_params=cparams,
            cost_estimate=cost,
        )(t2d, w2d)
    else:
        b2d = bias.reshape(1, D).astype(jnp.float32)
        out2d = pl.pallas_call(
            _time_encoder_bias_kernel,
            out_shape=jax.ShapeDtypeStruct((M, D), out_dtype),
            grid_spec=pl.GridSpec(
                grid=grid,
                in_specs=[t_spec, w_spec, w_spec],
                out_specs=out_spec,
            ),
            compiler_params=cparams,
            cost_estimate=cost,
        )(t2d, w2d, b2d)

    return out2d.reshape(B, L, D)


if __name__ == "__main__":
    # Module config (deterministic init, matches TimeEncoder.__init__)
    time_dim = 128
    batch_size, seq_len = 2, 8

    weight = jnp.asarray(
        1.0 / 10.0 ** np.linspace(0, 9, time_dim, dtype=np.float32))  # (time_dim,)

    # Deterministic example input
    key = jax.random.PRNGKey(0)
    timestamps = jax.random.uniform(
        key, (batch_size, seq_len), dtype=jnp.float32, minval=0.0, maxval=1000.0)

    # TPU f32 cos approximation vs the XLA/NumPy reference: allow a few 1e-5.
    ATOL, RTOL = 5e-4, 5e-3

    # 1) Default-initialized module (zero bias) -> fast no-bias kernel path.
    #    xla_small_bytes=0 forces the Pallas kernel even at this tiny shape.
    out = time_encoder(timestamps, weight, xla_small_bytes=0)
    out = jax.block_until_ready(out)
    ref = jnp.cos(timestamps[..., None] * weight[None, None, :])
    assert out.shape == (batch_size, seq_len, time_dim), out.shape
    np.testing.assert_allclose(np.asarray(out), np.asarray(ref),
                               atol=ATOL, rtol=RTOL)

    # 2) General path: trained (non-zero) bias parameter.
    bias2 = jax.random.normal(jax.random.PRNGKey(1), (time_dim,), dtype=jnp.float32)
    out_b = jax.block_until_ready(
        time_encoder(timestamps, weight, bias2, xla_small_bytes=0))
    ref_b = jnp.cos(timestamps[..., None] * weight[None, None, :]
                    + bias2[None, None, :])
    np.testing.assert_allclose(np.asarray(out_b), np.asarray(ref_b),
                               atol=ATOL, rtol=RTOL)

    # 3) Larger input: exercises the multi-step grid + ragged trailing block
    #    (M = 3*700 = 2100 rows, not a multiple of the row tile).
    ts_big = jax.random.uniform(
        jax.random.PRNGKey(2), (3, 700), dtype=jnp.float32, minval=0.0, maxval=1e6)
    out_big = jax.block_until_ready(time_encoder(ts_big, weight))
    ref_big = jnp.cos(ts_big[..., None] * weight[None, None, :])
    np.testing.assert_allclose(np.asarray(out_big), np.asarray(ref_big),
                               atol=ATOL, rtol=RTOL)

    # 4) Small-input XLA fast path (default threshold) -- sanity only.
    out_small = jax.block_until_ready(time_encoder(timestamps, weight))
    np.testing.assert_allclose(np.asarray(out_small), np.asarray(ref),
                               atol=ATOL, rtol=RTOL)

    print("KERNEL_OK")
</pallas_src>

<mosaic_0001>
module attributes {stable_mosaic.version = 11 : i64} {
  func.func @_time_encoder_kernel(%arg0: i32, %arg1: memref<8x1xf32, #tpu.memory_space<vmem>>, %arg2: memref<1x128xf32, #tpu.memory_space<vmem>>, %arg3: memref<8x128xf32, #tpu.memory_space<vmem>>) attributes {dimension_semantics = [#tpu.dimension_semantics<parallel>], iteration_bounds = array<i64: 2>, scalar_prefetch = 0 : i64, scratch_operands = 0 : i64, tpu.core_type = #tpu.core_type<tc>, window_params = [{transform_indices = @transform_0, window_bounds = array<i64: 8, 1>}, {pipeline_mode = #tpu.pipeline_mode<synchronous>, transform_indices = @transform_1, window_bounds = array<i64: 1, 128>}, {transform_indices = @transform_2, window_bounds = array<i64: 8, 128>}]} {
    %c0 = arith.constant 0 : index
    %c0_0 = arith.constant 0 : index
    %0 = vector.load %arg1[%c0, %c0_0] : memref<8x1xf32, #tpu.memory_space<vmem>>, vector<8x1xf32>
    %c0_1 = arith.constant 0 : index
    %c0_2 = arith.constant 0 : index
    %1 = vector.load %arg2[%c0_1, %c0_2] : memref<1x128xf32, #tpu.memory_space<vmem>>, vector<1x128xf32>
    %2 = vector.broadcast %0 : vector<8x1xf32> to vector<8x128xf32>
    %3 = vector.broadcast %1 : vector<1x128xf32> to vector<8x128xf32>
    %4 = arith.mulf %2, %3 : vector<8x128xf32>
    %5 = math.cos %4 : vector<8x128xf32>
    %c0_3 = arith.constant 0 : index
    %c0_4 = arith.constant 0 : index
    %6 = vector.load %arg3[%c0_3, %c0_4] : memref<8x128xf32, #tpu.memory_space<vmem>>, vector<8x128xf32>
    tpu.vector_store %arg3[%c0_3, %c0_4], %5 {strides = array<i32>} : memref<8x128xf32, #tpu.memory_space<vmem>>, vector<8x128xf32>,
    return
  }
  func.func @transform_0(%arg0: i32) -> (i32, i32) {
    %c0_i32 = arith.constant 0 : i32
    %c0_i32_0 = arith.constant 0 : i32
    return %arg0, %c0_i32 : i32, i32
  }
  func.func @transform_1(%arg0: i32) -> (i32, i32) {
    %c0_i32 = arith.constant 0 : i32
    %c0_i32_0 = arith.constant 0 : i32
    %c0_i32_1 = arith.constant 0 : i32
    return %c0_i32, %c0_i32_0 : i32, i32
  }
  func.func @transform_2(%arg0: i32) -> (i32, i32) {
    %c0_i32 = arith.constant 0 : i32
    %c0_i32_0 = arith.constant 0 : i32
    return %arg0, %c0_i32 : i32, i32
  }
}

</mosaic_0001>

<llo_original>
// kernel: tpu_custom_call.1
$region0: #{tpu_custom_call.1}
  #allocation0 [shape = 'u32[]', space=smem, size = 0x4, offset = 0x4, fixed_abs, tag = 'smem constant byte address 0x4 - core index']
  #allocation1 [shape = 'u32[72,128]{1,0:T(1,128)}', space=vmem, size = 0x9000, scoped, tag = 'internal scratch']
  %s0 = inlined_call_operand.vmem [shape: f32[16,1], index: 0, kind: input, shape index: {}]
  %s1 = inlined_call_operand.vmem [shape: f32[1,128], index: 1, kind: input, shape index: {}]
  %s2 = inlined_call_operand.hbm [shape: f32[16,128], index: 2, kind: output, shape index: {}]
  %s3 = sld [smem:[#allocation0]]
  $region41: #{tpu_custom_call.1} parent=0
    _
  %s5 = ssub.s32 1, %s3
  %s6 = scalar_select 0, %s5, %s3
  $region1: #{tpu_custom_call.1} parent=0
    #allocation2 [shape = 'u8[8192]{0}', space=vmem, size = 0x2000, scoped, tag = 'output window, operand 0']
    #allocation3 [shape = 's32[2]{0}', space=sflag, size = 0x8, scoped, tag = 'scoped memory for tpu_custom_call.1']
    %7 = vsyncpa [#allocation3], 0
    %s8 = scalar_lea.sflag [#allocation3], 1
    %9 = vsyncpa %s8, 0
    loop: start=0, step=1, limit=4
    $region2: #{tpu_custom_call.1} parent=1 // loop_pre_header
      _
    $region3: #{tpu_custom_call.1} parent=1 // loop_header
      %s11 = sphi 0, %s15
      %p12 = scmp.ge.s32.totalorder %s11, 4
      %s21 = sphi 0, %s23
      %s24 = sphi 0, %s21
      %s25 = sphi 0, %s24
      %s41 = sphi 0, %s25
      %s45 = sphi 0, %s45
      %s47 = sphi 0, %s45
      %s48 = sphi 0, %s47
      %s62 = sphi 0, %s48
      %s68 = sphi 0, %s70
      %s71 = sphi 0, %s68
      %s72 = sphi 0, %s71
      %s88 = sphi 0, %s72
    $region4: #{tpu_custom_call.1} parent=1 // loop_header_branch
      %14 = sbr.rel (%p12) target = $region8
    $region5: #{tpu_custom_call.1} parent=1 // loop_body
      %s16 = ssub.s32 %s11, 1
      %s17 = ssub.s32 %s11, 2
      %s18 = sadd.s32 %s11, 1
      %s19 = ssub.s32 %s11, %s18
      %p20 = scmp.eq.s32.totalorder %s19, 0
      %s22 = sadd.s32 %s21, 1
      %s23 = scalar_select %p20, %s21, %s22
      %p26 = pneg %p20
      %p27 = scmp.eq.s32.totalorder %s11, 1
      %p28 = por %p26, %p27
      %p29 = scmp.ne.s32.totalorder %s21, %s24
      %p30 = scmp.eq.s32.totalorder %s11, 0
      %p31 = por %p29, %p30
      %p32 = scmp.ne.s32.totalorder %s21, %s24
      %p33 = scmp.eq.s32.totalorder %s16, 1
      %p34 = por %p32, %p33
      %p35 = scmp.ne.s32.totalorder %s24, %s25
      %p36 = scmp.eq.s32.totalorder %s16, 0
      %p37 = por %p35, %p36
      %p38 = scmp.ne.s32.totalorder %s24, %s25
      %p39 = scmp.eq.s32.totalorder %s17, 1
      %p40 = por %p38, %p39
      %p42 = scmp.ne.s32.totalorder %s25, %s41
      %p43 = scmp.eq.s32.totalorder %s17, 0
      %p44 = por %p42, %p43
      %s46 = sadd.s32 %s45, 1
      %p49 = scmp.eq.s32.totalorder %s11, 1
      %p50 = scmp.ne.s32.totalorder %s45, %s47
      %p51 = scmp.eq.s32.totalorder %s11, 0
      %p52 = por %p50, %p51
      %p53 = scmp.ne.s32.totalorder %s45, %s47
      %p54 = scmp.eq.s32.totalorder %s16, 1
      %p55 = por %p53, %p54
      %p56 = scmp.ne.s32.totalorder %s47, %s48
      %p57 = scmp.eq.s32.totalorder %s16, 0
      %p58 = por %p56, %p57
      %p59 = scmp.ne.s32.totalorder %s47, %s48
      %p60 = scmp.eq.s32.totalorder %s17, 1
      %p61 = por %p59, %p60
      %p63 = scmp.ne.s32.totalorder %s48, %s62
      %p64 = scmp.eq.s32.totalorder %s17, 0
      %p65 = por %p63, %p64
      %s66 = ssub.s32 %s11, %s18
      %p67 = scmp.eq.s32.totalorder %s66, 0
      %s69 = sadd.s32 %s68, 1
      %s70 = scalar_select %p67, %s68, %s69
      %p73 = pneg %p67
      %p74 = scmp.eq.s32.totalorder %s11, 1
      %p75 = por %p73, %p74
      %p76 = scmp.ne.s32.totalorder %s68, %s71
      %p77 = scmp.eq.s32.totalorder %s11, 0
      %p78 = por %p76, %p77
      %p79 = scmp.ne.s32.totalorder %s68, %s71
      %p80 = scmp.eq.s32.totalorder %s16, 1
      %p81 = por %p79, %p80
      %p82 = scmp.ne.s32.totalorder %s71, %s72
      %p83 = scmp.eq.s32.totalorder %s16, 0
      %p84 = por %p82, %p83
      %p85 = scmp.ne.s32.totalorder %s71, %s72
      %p86 = scmp.eq.s32.totalorder %s17, 1
      %p87 = por %p85, %p86
      %p89 = scmp.ne.s32.totalorder %s72, %s88
      %p90 = scmp.eq.s32.totalorder %s17, 0
      %p91 = por %p89, %p90
      %p92 = scmp.le.s32.totalorder 1, %s11
      %p93 = scmp.lt.s32.totalorder %s11, 3
      %p94 = pnand %p92, %p93
      %p95 = pneg %p94
      // Predicated region
      $region9: #{tpu_custom_call.1} parent=5 // pred_check
        _
      $region10: #{tpu_custom_call.1} parent=5 // pred_check_branch
        %97 = sbr.rel (%p94) target = $region12
      $region11: #{tpu_custom_call.1} parent=5 // pred_region
        %s98 = ssub.s32 %s11, 1
        // Predicated region
        $region13: #{tpu_custom_call.1} parent=11 // pred_check
          %p99 = pneg %p58
        $region14: #{tpu_custom_call.1} parent=11 // pred_check_branch
          %101 = sbr.rel (%p99) target = $region16
        $region15: #{tpu_custom_call.1} parent=11 // pred_region
          _
        $region16: #{tpu_custom_call.1} parent=11 // pred_fallthru
          _
      $region12: #{tpu_custom_call.1} parent=5 // pred_fallthru
        _
      %p102 = scmp.lt.s32.totalorder %s11, 2
      // Predicated region
      $region17: #{tpu_custom_call.1} parent=5 // pred_check
        %p103 = pneg %p102
      $region18: #{tpu_custom_call.1} parent=5 // pred_check_branch
        %105 = sbr.rel (%p103) target = $region20
      $region19: #{tpu_custom_call.1} parent=5 // pred_region
        // Predicated region
        $region21: #{tpu_custom_call.1} parent=19 // pred_check
          %p106 = pneg %p31
        $region22: #{tpu_custom_call.1} parent=19 // pred_check_branch
          %108 = sbr.rel (%p106) target = $region24
        $region23: #{tpu_custom_call.1} parent=19 // pred_region
          %p109 = scmp.lt.s32.totalorder %s11, 1
          %s110 = scalar_select %p109, %s11, 1
          %s111 = smul.addr %s110, 8
          %s112 = scalar_lea.vmem %s0, %s111
        $region24: #{tpu_custom_call.1} parent=19 // pred_fallthru
          _
      $region20: #{tpu_custom_call.1} parent=5 // pred_fallthru
        _
      %p113 = scmp.le.s32.totalorder 1, %s11
      %p114 = scmp.lt.s32.totalorder %s11, 3
      %p115 = pnand %p113, %p114
      %p116 = pneg %p115
      // Predicated region
      $region25: #{tpu_custom_call.1} parent=5 // pred_check
        _
      $region26: #{tpu_custom_call.1} parent=5 // pred_check_branch
        %118 = sbr.rel (%p115) target = $region28
      $region27: #{tpu_custom_call.1} parent=5 // pred_region
        %s119 = ssub.s32 %s11, 1
        %p120 = scmp.lt.s32.totalorder %s16, 1
        %s121 = scalar_select %p120, %s16, 1
        %s122 = smul.addr %s121, 8
        %s123 = scalar_lea.vmem %s0, %s122
        %p124 = pneg %p37
        %p125 = pneg %p34
        %p126 = pneg %p58
        %p127 = pneg %p55
        %p128 = pneg %p84
        %p129 = pneg %p81
        %s130 = sand.u32 %s71, 1
        %s131 = scalar_lea.sflag [#allocation3], %s130
        %s132 = sand.u32 %s71, 1
        %s133 = smul.addr %s132, 8
        %s134 = scalar_lea.vmem [#allocation2], %s133
        %p135 = scmp.lt.s32.totalorder %s16, 1
        %s136 = scalar_select %p135, %s16, 1
        %s137 = smul.addr %s136, 8
        %s138 = scalar_lea.vmem %s0, %s137
        %v139 = vld [vmem:[%s138] sm:$0xff]
        %v140 = vld [vmem:[%s1] sm:$0x1]
        %142 = vset.pattern.permute.xlu0 0
        %143 = vperm.xlu0 %142, %v139
        %v144 = vpop.permute.xlu0 %143
        %v147 = vperm.slane %v140, 0
        %v149 = vmul.f32 %v144, %v147
        %v150 = vand.u32 2147483647, %v149
        %vm151 = vcmp.le.f32.partialorder %v150, 0.7853982
        %vm152 = vcmp.lt.s32.totalorder %v149, 0
        %v153 = vand.u32 %v149, 2139095040
        %v154 = vshrl.u32 %v153, 23
        %v155 = vsub.s32 %v154, 127
        %v156 = vand.u32 2147483647, %v149
        %v157 = vand.u32 %v156, 8388607
        %v158 = vor.u32 %v157, 8388608
        %v159 = vsub.s32 0, %v158
        %v160 = vadd.s32 %v155, 1
        %vm161 = vcmp.gt.s32.totalorder %v160, 0
        %v162 = vsel %vm161, %v160, 0
        %v163 = vshrl.u32 %v162, 5
        %v164 = vand.u32 %v162, 31
        %v165 = vsub.s32 32, %v164
        %v166 = vshrl.u32 683565275, %v165
        %v167 = vshll.u32 683565275, %v164
        %v168 = vshrl.u32 2475754826, %v165
        %v169 = vor.u32 %v167, %v168
        %v170 = vshll.u32 2475754826, %v164
        %v171 = vshrl.u32 2131351028, %v165
        %v172 = vor.u32 %v170, %v171
        %v173 = vshll.u32 2131351028, %v164
        %v174 = vshrl.u32 2102212464, %v165
        %v175 = vor.u32 %v173, %v174
        %v176 = vshll.u32 2102212464, %v164
        %v177 = vshrl.u32 920167782, %v165
        %v178 = vor.u32 %v176, %v177
        %v179 = vshll.u32 920167782, %v164
        %v180 = vshrl.u32 1326507024, %v165
        %v181 = vor.u32 %v179, %v180
        %vm182 = vcmp.lt.s32.totalorder %v163, 1
        %vm183 = vcmp.lt.s32.totalorder %v163, 2
        %vm184 = vcmp.lt.s32.totalorder %v163, 3
        %vm185 = vcmp.lt.s32.totalorder %v163, 4
        %v186 = vsel %vm182, %v166, %v169
        %v187 = vsel %vm185, %v175, 2102212464
        %v188 = vsel %vm184, %v172, %v187
        %v189 = vsel %vm183, %v186, %v188
        %v190 = vsel %vm182, %v169, %v172
        %v191 = vsel %vm185, %v178, 920167782
        %v192 = vsel %vm184, %v175, %v191
        %v193 = vsel %vm183, %v190, %v192
        %v194 = vsel %vm182, %v172, %v175
        %v195 = vsel %vm185, %v181, 1326507024
        %v196 = vsel %vm184, %v178, %v195
        %v197 = vsel %vm183, %v194, %v196
        %v198 = vshll.u32 %v158, 8
        %v199 = vand.u32 %v198, 65535
        %v200 = vshrl.u32 %v198, 16
        %v201 = vand.u32 %v197, 65535
        %v202 = vshrl.u32 %v197, 16
        %v203 = vmul.u32 %v199, %v201
        %v204 = vmul.u32 %v199, %v202
        %v205 = vmul.u32 %v200, %v201
        %v206 = vmul.u32 %v200, %v202
        %v207 = vshll.u32 %v204, 16
        %v208 = vshrl.u32 %v204, 16
        %v209 = vshll.u32 %v205, 16
        %v210 = vshrl.u32 %v205, 16
        %vm211 = vc.u32 %v203, %v207
        %v212 = vsel %vm211, 1, 0
        %v213 = vadd.s32 %v203, %v207
        %v214 = vadd.s32 %v206, %v212
        %vm215 = vc.u32 %v213, %v209
        %v216 = vsel %vm215, 1, 0
        %v217 = vadd.s32 %v213, %v209
        %v218 = vadd.s32 %v214, %v216
        %v219 = vadd.s32 %v218, %v208
        %v220 = vadd.s32 %v219, %v210
        %v221 = vand.u32 %v198, 65535
        %v222 = vshrl.u32 %v198, 16
        %v223 = vand.u32 %v193, 65535
        %v224 = vshrl.u32 %v193, 16
        %v225 = vmul.u32 %v221, %v223
        %v226 = vmul.u32 %v221, %v224
        %v227 = vmul.u32 %v222, %v223
        %v228 = vmul.u32 %v222, %v224
        %v229 = vshll.u32 %v226, 16
        %v230 = vshrl.u32 %v226, 16
        %v231 = vshll.u32 %v227, 16
        %v232 = vshrl.u32 %v227, 16
        %vm233 = vc.u32 %v225, %v229
        %v234 = vsel %vm233, 1, 0
        %v235 = vadd.s32 %v225, %v229
        %v236 = vadd.s32 %v228, %v234
        %vm237 = vc.u32 %v235, %v231
        %v238 = vsel %vm237, 1, 0
        %v239 = vadd.s32 %v235, %v231
        %v240 = vadd.s32 %v236, %v238
        %v241 = vadd.s32 %v240, %v230
        %v242 = vadd.s32 %v241, %v232
        %v243 = vmul.u32 %v198, %v189
        %v244 = vadd.s32 %v220, %v239
        %vm245 = vc.u32 %v220, %v239
        %v246 = vadd.s32 %v242, 1
        %v247 = vsel %vm245, %v246, %v242
        %v248 = vadd.s32 %v243, %v247
        %v249 = vadd.s32 %v248, 536870912
        %v250 = vshrl.u32 %v249, 30
        %v251 = vshll.u32 %v250, 30
        %v252 = vsub.s32 %v248, %v251
        %vm253 = vcmp.lt.s32.totalorder %v252, 0
        %v254 = vsub.s32 0, %v252
        %v255 = vsel %vm253, %v254, %v252
        %v256 = vclz %v255
        %v257 = vsub.s32 %v256, 2
        %vm258 = vcmp.gt.s32.totalorder 0, %v257
        %v259 = vsel %vm258, 0, %v257
        %v260 = vsub.s32 32, %v259
        %v261 = vshll.u32 %v252, %v259
        %v262 = vshrl.u32 %v244, %v260
        %v263 = vor.u32 %v261, %v262
        %v264 = vsub.s32 4294967266, %v259
        %v265 = vadd.s32 %v264, 127
        %v266 = vshll.u32 %v265, 23
        %v267 = vor.u32 4788187, %v266
        %v268 = vand.u32 2147483647, %v267
        %v270 = vcvt.s32.f32 %v263
        %v271 = vmul.f32 %v270, %v268
        %v272 = vxor.u32 %v271, 2147483648
        %v273 = vsel %vm152, %v272, %v271
        %v274 = vsub.s32 4, %v250
        %v275 = vsel %vm152, %v274, %v250
        %v276 = vsel %vm151, %v149, %v273
        %v277 = vsel %vm151, 0, %v275
        %v278 = vmul.f32 %v276, %v276
        %v279 = vmul.f32 %v278, -0.001358992
        %v280 = vadd.f32 %v279, 0.041655596
        %v281 = vmul.f32 %v278, %v280
        %v282 = vadd.f32 %v281, -0.4999988
        %v283 = vmul.f32 %v278, %v282
        %v284 = vadd.f32 1.0, %v283
        %v285 = vmul.f32 %v276, %v276
        %v286 = vmul.f32 %v285, -0.00019511016
        %v287 = vadd.f32 %v286, 0.008332121
        %v288 = vmul.f32 %v285, %v287
        %v289 = vadd.f32 %v288, -0.16666654
        %v290 = vmul.f32 %v285, %v289
        %v291 = vadd.f32 %v290, 1.0
        %v292 = vmul.f32 %v291, %v276
        %vm293 = vweird.f32 %v149
        %v294 = vand.u32 %v277, 3
        %vm295 = vcmp.lt.s32.totalorder %v294, 2
        %vm296 = vcmp.eq.s32.totalorder %v294, 0
        %v297 = vxor.u32 %v292, 2147483648
        %v298 = vsel %vm296, %v284, %v297
        %vm299 = vcmp.eq.s32.totalorder %v294, 2
        %v300 = vxor.u32 %v284, 2147483648
        %v301 = vsel %vm299, %v300, %v292
        %v302 = vsel %vm295, %v298, %v301
        %v303 = vsel %vm293, nan, %v302
        %304 = vst [vmem:[%s134] sm:$0xff] %v303
        %s305 = sand.u32 %s71, 1
        %s306 = scalar_lea.sflag [#allocation3], %s305
        %s307 = sand.u32 %s71, 1
        %s308 = smul.addr %s307, 8
        %s309 = scalar_lea.vmem [#allocation2], %s308
        // Predicated region
        $region29: #{tpu_custom_call.1} parent=27 // pred_check
          %p310 = pneg %p81
        $region30: #{tpu_custom_call.1} parent=27 // pred_check_branch
          %312 = sbr.rel (%p310) target = $region32
        $region31: #{tpu_custom_call.1} parent=27 // pred_region
          %314 = vsyncadd %s306, 0
          %s315 = smul.addr %s16, 8
          %s316 = scalar_lea.hbm %s2, %s315
          %s318 = sshll.u32 %s309, 4
          %s319 = int_to_ptr.vmem [resolvable:$true] %s318
          %s320 = sshll.u32 %s316, 4
          %s321 = int_to_ptr.hbm [resolvable:$true] %s320
          %323 = dma.vmem_to_hbm [thread:$0]  %s319, 128, %s321, %s306
        $region32: #{tpu_custom_call.1} parent=27 // pred_fallthru
          _
      $region28: #{tpu_custom_call.1} parent=5 // pred_fallthru
        _
      %p324 = scmp.le.s32.totalorder 2, %s11
      // Predicated region
      $region33: #{tpu_custom_call.1} parent=5 // pred_check
        %p325 = pneg %p324
      $region34: #{tpu_custom_call.1} parent=5 // pred_check_branch
        %327 = sbr.rel (%p325) target = $region36
      $region35: #{tpu_custom_call.1} parent=5 // pred_region
        %s328 = ssub.s32 %s11, 2
        // Predicated region
        $region37: #{tpu_custom_call.1} parent=35 // pred_check
          %p329 = pneg %p87
        $region38: #{tpu_custom_call.1} parent=35 // pred_check_branch
          %331 = sbr.rel (%p329) target = $region40
        $region39: #{tpu_custom_call.1} parent=35 // pred_region
          %s332 = sand.u32 %s72, 1
          %s333 = scalar_lea.sflag [#allocation3], %s332
          %s334 = sand.u32 %s72, 1
          %s335 = smul.addr %s334, 8
          %s336 = scalar_lea.vmem [#allocation2], %s335
          %338 = dma.done %s333, 128
        $region40: #{tpu_custom_call.1} parent=35 // pred_fallthru
          _
      $region36: #{tpu_custom_call.1} parent=5 // pred_fallthru
        _
    $region6: #{tpu_custom_call.1} parent=1 // loop_footer
      %s15 = sadd.s32 1, %s11
    $region7: #{tpu_custom_call.1} parent=1 // loop_footer_branch
      %10 = sbr.rel target = $region3
    $region8: #{tpu_custom_call.1} parent=1 // loop_exit
      _
    %339 = vsyncpa [#allocation3], 1
    %s340 = scalar_lea.sflag [#allocation3], 1
    %341 = vsyncpa %s340, 1

</llo_original>
